<compile_context>
chip_gen: v7x
topology: tpu7x:2x2x1
jax: 0.10.0
libtpu: 0.0.40
codegen_flags: <defaults>
</compile_context>

<pallas_src>
import jax
import jax.numpy as jnp
from jax.experimental import pallas as pl
from jax.experimental.pallas import tpu as pltpu


_LANE = 512                      # lane-dense block width (multiple of 128)
_TM_MAX = 1024                   # rows per block -> (1024, 512) f32 = 2 MiB
_SMALL_VMEM_BYTES = 8 * 1024 * 1024   # cap for single-block fast path (in+out)


def _ste_kernel(x_ref, o_ref):
    # Elementwise float -> int cast; XLA convert truncates toward zero,
    # matching torch .long() for finite in-range values.
    o_ref[...] = x_ref[...].astype(o_ref.dtype)


def _round_up(v: int, m: int) -> int:
    return ((v + m - 1) // m) * m


def straight_through_estimator(x: jax.Array) -> jax.Array:
    """Forward of StraightThroughEstimator: truncate-to-int cast, elementwise.

    Accepts any shape (e.g. NCHW); returns an int32 array of the same shape.
    """
    orig_shape = x.shape
    n = x.size
    out_dtype = jnp.int32

    if n == 0:
        return jnp.zeros(orig_shape, out_dtype)

    # ---------- Fast path: whole array as one VMEM block ----------
    # Collapse to 2D (metadata-only reshape for a contiguous array) so the
    # block satisfies the "full array dims" form of the (8, 128) constraint.
    if x.ndim >= 1:
        view2d = x.reshape(-1, orig_shape[-1])
    else:
        view2d = x.reshape(1, 1)
    R, Cv = view2d.shape
    padded_bytes = _round_up(R, 8) * _round_up(Cv, 128) * 4 * 2  # f32 in + i32 out
    if padded_bytes <= _SMALL_VMEM_BYTES:
        out2d = pl.pallas_call(
            _ste_kernel,
            out_shape=jax.ShapeDtypeStruct((R, Cv), out_dtype),
        )(view2d)
        return out2d.reshape(orig_shape)

    # ---------- Tiled path: flatten, pad, pipeline over a 1-D grid ----------
    C = _LANE
    TM = _TM_MAX
    rows = pl.cdiv(n, C)
    if rows <= TM:
        # Single block; round rows up to a multiple of 8 (sublane tiling).
        TM = max(8, _round_up(rows, 8))
        rows = TM
    else:
        # Full, unmasked (TM, C) block on every grid step.
        rows = _round_up(rows, TM)

    n_pad = rows * C
    flat = x.reshape(-1)
    if n_pad != n:
        flat = jnp.pad(flat, (0, n_pad - n))
    x2d = flat.reshape(rows, C)

    grid = (rows // TM,)
    out2d = pl.pallas_call(
        _ste_kernel,
        out_shape=jax.ShapeDtypeStruct((rows, C), out_dtype),
        grid_spec=pl.GridSpec(
            grid=grid,
            in_specs=[pl.BlockSpec((TM, C), lambda i: (i, 0))],
            out_specs=pl.BlockSpec((TM, C), lambda i: (i, 0)),
        ),
        compiler_params=pltpu.CompilerParams(
            # Parallel: lets v7x shard grid steps over its 2 TensorCores;
            # neutral on single-TC v5e/v6e.
            dimension_semantics=("parallel",),
        ),
        # Bandwidth-bound hint for XLA's scheduler: read + write n_pad f32/i32.
        cost_estimate=pl.CostEstimate(
            flops=0, transcendentals=0, bytes_accessed=8 * n_pad
        ),
    )(x2d)

    # Strip padding and restore the original layout.
    return out2d.reshape(-1)[:n].reshape(orig_shape)


if __name__ == "__main__":
    key = jax.random.PRNGKey(0)
    k1, k2 = jax.random.split(key)

    # Small NCHW input consistent with the module being applied to activations
    # (exercises the single-block fast path).
    x_small = jax.random.normal(k1, (2, 4, 16, 16), dtype=jnp.float32) * 3.0
    y_small = jax.block_until_ready(straight_through_estimator(x_small))
    ref_small = jnp.trunc(x_small).astype(jnp.int32)
    assert y_small.shape == x_small.shape
    assert y_small.dtype == jnp.int32
    assert bool(jnp.all(y_small == ref_small))

    # Larger input to exercise the tiled / pipelined path.
    x_big = jax.random.normal(k2, (8, 64, 64, 64), dtype=jnp.float32) * 5.0
    y_big = jax.block_until_ready(straight_through_estimator(x_big))
    ref_big = jnp.trunc(x_big).astype(jnp.int32)
    assert y_big.shape == x_big.shape
    assert bool(jnp.all(y_big == ref_big))

    print("KERNEL_OK")
</pallas_src>

<mosaic_0001>
module attributes {stable_mosaic.version = 11 : i64} {
  func.func @_ste_kernel(%arg0: memref<128x16xf32, #tpu.memory_space<vmem>>, %arg1: memref<128x16xi32, #tpu.memory_space<vmem>>) attributes {dimension_semantics = [], scalar_prefetch = 0 : i64, scratch_operands = 0 : i64, tpu.core_type = #tpu.core_type<tc>} {
    %c0 = arith.constant 0 : index
    %c0_0 = arith.constant 0 : index
    %0 = vector.load %arg0[%c0, %c0_0] : memref<128x16xf32, #tpu.memory_space<vmem>>, vector<128x16xf32>
    %1 = arith.fptosi %0 : vector<128x16xf32> to vector<128x16xi32>
    %c0_1 = arith.constant 0 : index
    %c0_2 = arith.constant 0 : index
    %2 = vector.load %arg1[%c0_1, %c0_2] : memref<128x16xi32, #tpu.memory_space<vmem>>, vector<128x16xi32>
    tpu.vector_store %arg1[%c0_1, %c0_2], %1 {strides = array<i32>} : memref<128x16xi32, #tpu.memory_space<vmem>>, vector<128x16xi32>,
    return
  }
}

</mosaic_0001>

<llo_original>
// kernel: tpu_custom_call.1
$region0: #{tpu_custom_call.1}
  #allocation0 [shape = 'u32[]', space=smem, size = 0x4, offset = 0x4, fixed_abs, tag = 'smem constant byte address 0x4 - core index']
  #allocation1 [shape = 'u32[144,128]{1,0:T(1,128)}', space=vmem, size = 0x12000, scoped, tag = 'internal scratch']
  %s0 = inlined_call_operand.vmem [shape: f32[128,16], index: 0, kind: input, shape index: {}]
  %s1 = inlined_call_operand.vmem [shape: s32[128,16], index: 1, kind: output, shape index: {}]
  %s2 = sld [smem:[#allocation0]]
  $region14: #{tpu_custom_call.1} parent=0
    _
  %s4 = ssub.s32 1, %s2
  %s5 = scalar_select 0, %s4, %s2
  // Predicated region
  $region2: #{tpu_custom_call.1} parent=0 // pred_check
    _
  $region3: #{tpu_custom_call.1} parent=0 // pred_check_branch
    %7 = sbr.rel (0) target = $region5
  $region4: #{tpu_custom_call.1} parent=0 // pred_region
    _
  $region5: #{tpu_custom_call.1} parent=0 // pred_fallthru
    _
  %v8 = vld [vmem:[%s0] sm:$0xff]
  %v9 = vld [vmem:[%s0 + $0x8] sm:$0xff]
  %v10 = vld [vmem:[%s0 + $0x10] sm:$0xff]
  %v11 = vld [vmem:[%s0 + $0x18] sm:$0xff]
  %v12 = vld [vmem:[%s0 + $0x20] sm:$0xff]
  %v13 = vld [vmem:[%s0 + $0x28] sm:$0xff]
  %v14 = vld [vmem:[%s0 + $0x30] sm:$0xff]
  %v15 = vld [vmem:[%s0 + $0x38] sm:$0xff]
  %v16 = vld [vmem:[%s0 + $0x40] sm:$0xff]
  %v17 = vld [vmem:[%s0 + $0x48] sm:$0xff]
  %v18 = vld [vmem:[%s0 + $0x50] sm:$0xff]
  %v19 = vld [vmem:[%s0 + $0x58] sm:$0xff]
  %v20 = vld [vmem:[%s0 + $0x60] sm:$0xff]
  %v21 = vld [vmem:[%s0 + $0x68] sm:$0xff]
  %v22 = vld [vmem:[%s0 + $0x70] sm:$0xff]
  %v23 = vld [vmem:[%s0 + $0x78] sm:$0xff]
  %v24 = vcvt.f32.s32.to.zero.pseudo %v8
  %v25 = vcvt.f32.s32.to.zero.pseudo %v9
  %v26 = vcvt.f32.s32.to.zero.pseudo %v10
  %v27 = vcvt.f32.s32.to.zero.pseudo %v11
  %v28 = vcvt.f32.s32.to.zero.pseudo %v12
  %v29 = vcvt.f32.s32.to.zero.pseudo %v13
  %v30 = vcvt.f32.s32.to.zero.pseudo %v14
  %v31 = vcvt.f32.s32.to.zero.pseudo %v15
  %v32 = vcvt.f32.s32.to.zero.pseudo %v16
  %v33 = vcvt.f32.s32.to.zero.pseudo %v17
  %v34 = vcvt.f32.s32.to.zero.pseudo %v18
  %v35 = vcvt.f32.s32.to.zero.pseudo %v19
  %v36 = vcvt.f32.s32.to.zero.pseudo %v20
  %v37 = vcvt.f32.s32.to.zero.pseudo %v21
  %v38 = vcvt.f32.s32.to.zero.pseudo %v22
  %v39 = vcvt.f32.s32.to.zero.pseudo %v23
  %vm40 = vcmask 130048
  %41 = vst.msk [vmem:[%s1] sm:$0xff] %vm40, %v24
  %42 = vst.msk [vmem:[%s1 + $0x8] sm:$0xff] %vm40, %v25
  %43 = vst.msk [vmem:[%s1 + $0x10] sm:$0xff] %vm40, %v26
  %44 = vst.msk [vmem:[%s1 + $0x18] sm:$0xff] %vm40, %v27
  %45 = vst.msk [vmem:[%s1 + $0x20] sm:$0xff] %vm40, %v28
  %46 = vst.msk [vmem:[%s1 + $0x28] sm:$0xff] %vm40, %v29
  %47 = vst.msk [vmem:[%s1 + $0x30] sm:$0xff] %vm40, %v30
  %48 = vst.msk [vmem:[%s1 + $0x38] sm:$0xff] %vm40, %v31
  %49 = vst.msk [vmem:[%s1 + $0x40] sm:$0xff] %vm40, %v32
  %50 = vst.msk [vmem:[%s1 + $0x48] sm:$0xff] %vm40, %v33
  %51 = vst.msk [vmem:[%s1 + $0x50] sm:$0xff] %vm40, %v34
  %52 = vst.msk [vmem:[%s1 + $0x58] sm:$0xff] %vm40, %v35
  %53 = vst.msk [vmem:[%s1 + $0x60] sm:$0xff] %vm40, %v36
  %54 = vst.msk [vmem:[%s1 + $0x68] sm:$0xff] %vm40, %v37
  %55 = vst.msk [vmem:[%s1 + $0x70] sm:$0xff] %vm40, %v38
  %56 = vst.msk [vmem:[%s1 + $0x78] sm:$0xff] %vm40, %v39
  // Predicated region
  $region6: #{tpu_custom_call.1} parent=0 // pred_check
    _
  $region7: #{tpu_custom_call.1} parent=0 // pred_check_branch
    %58 = sbr.rel (0) target = $region9
  $region8: #{tpu_custom_call.1} parent=0 // pred_region
    _
  $region9: #{tpu_custom_call.1} parent=0 // pred_fallthru
    _
  // Predicated region
  $region10: #{tpu_custom_call.1} parent=0 // pred_check
    _
  $region11: #{tpu_custom_call.1} parent=0 // pred_check_branch
    %60 = sbr.rel (0) target = $region13
  $region12: #{tpu_custom_call.1} parent=0 // pred_region
    _
  $region13: #{tpu_custom_call.1} parent=0 // pred_fallthru
    _

</llo_original>
